<compile_context>
chip_gen: v7x
topology: tpu7x:2x2x1
jax: 0.10.0
libtpu: 0.0.40
codegen_flags: <defaults>
</compile_context>

<pallas_src>
import jax
import jax.numpy as jnp
from jax.experimental import pallas as pl
from jax.experimental.pallas import tpu as pltpu


def _pick_tile(dim, unit, max_tile):
    """Largest divisor of `dim` that is a multiple of `unit` and <= max_tile.

    Falls back to the full dim (always a legal Pallas block dim) when `dim` is not
    a multiple of `unit`.
    """
    if dim % unit != 0:
        return dim
    best = unit
    limit = min(dim, max_tile)
    t = unit
    while t <= limit:
        if dim % t == 0:
            best = t
        t += unit
    return best


# ---------------------------------------------------------------------------
# Kernel 1: per-row partial sum / sum-of-squares over the lane-dense [N*C, W*H]
# view.  Outputs are lane-dense (row, chunk) partials accumulated directly in
# the resident output block (accumulator pattern, P3).
# ---------------------------------------------------------------------------
def _make_moments_kernel(lane_tile, chunk):
    n_chunks = lane_tile // chunk

    def kernel(x_ref, sum_ref, sq_ref):
        j = pl.program_id(1)

        @pl.when(j == 0)
        def _():
            sum_ref[...] = jnp.zeros_like(sum_ref)
            sq_ref[...] = jnp.zeros_like(sq_ref)

        x = x_ref[...].astype(jnp.float32)
        s = sum_ref[...]
        q = sq_ref[...]
        for k in range(n_chunks):  # static unroll; 128-lane aligned slices
            c = x[:, k * chunk:(k + 1) * chunk]
            s = s + c
            q = q + c * c
        sum_ref[...] = s
        sq_ref[...] = q

    return kernel


def _row_partial_moments(x2, *, max_tile_bytes=2 << 20):
    """x2: [R, M] -> (partial sums [R, chunk], partial sum-of-squares [R, chunk])."""
    R, M = x2.shape
    row_tile = _pick_tile(R, 8, 64)
    max_lanes = max(128, (max_tile_bytes // 4) // max(row_tile, 1))
    lane_tile = _pick_tile(M, 128, max_lanes)
    chunk = 128 if lane_tile % 128 == 0 else lane_tile
    grid = (R // row_tile, M // lane_tile)

    kernel = _make_moments_kernel(lane_tile, chunk)

    partial_s, partial_q = pl.pallas_call(
        kernel,
        out_shape=(
            jax.ShapeDtypeStruct((R, chunk), jnp.float32),
            jax.ShapeDtypeStruct((R, chunk), jnp.float32),
        ),
        grid=grid,
        in_specs=[pl.BlockSpec((row_tile, lane_tile), lambda i, j: (i, j))],
        out_specs=(
            pl.BlockSpec((row_tile, chunk), lambda i, j: (i, 0)),
            pl.BlockSpec((row_tile, chunk), lambda i, j: (i, 0)),
        ),
        compiler_params=pltpu.CompilerParams(
            dimension_semantics=("parallel", "arbitrary"),
            vmem_limit_bytes=64 << 20),
    )(x2)
    return partial_s, partial_q


# ---------------------------------------------------------------------------
# Kernel 2: lane-dense elementwise normalization  out = x * scale[row] + bias[row].
# ---------------------------------------------------------------------------
def _normalize_kernel(scale_ref, bias_ref, x_ref, o_ref):
    x = x_ref[...].astype(jnp.float32)
    o_ref[...] = (x * scale_ref[...] + bias_ref[...]).astype(o_ref.dtype)


def _normalize_rows(x2, scale_rows, bias_rows, *, max_tile_bytes=2 << 20):
    R, M = x2.shape
    row_tile = _pick_tile(R, 8, 256)
    max_lanes = max(128, (max_tile_bytes // 4) // max(row_tile, 1))
    lane_tile = _pick_tile(M, 128, max_lanes)
    grid = (R // row_tile, M // lane_tile)

    return pl.pallas_call(
        _normalize_kernel,
        out_shape=jax.ShapeDtypeStruct((R, M), x2.dtype),
        grid=grid,
        in_specs=[
            pl.BlockSpec((row_tile, 1), lambda i, j: (i, 0)),
            pl.BlockSpec((row_tile, 1), lambda i, j: (i, 0)),
            pl.BlockSpec((row_tile, lane_tile), lambda i, j: (i, j)),
        ],
        out_specs=pl.BlockSpec((row_tile, lane_tile), lambda i, j: (i, j)),
        compiler_params=pltpu.CompilerParams(
            dimension_semantics=("parallel", "parallel"),
            vmem_limit_bytes=64 << 20),
    )(scale_rows, bias_rows, x2)


# ---------------------------------------------------------------------------
# Wrapper: StandardizeTransform.forward
# ---------------------------------------------------------------------------
def standardize_transform(x):
    """Pallas equivalent of StandardizeTransform.forward.  x: [N, C, W, H]."""
    N, C, W, H = x.shape
    R = N * C
    M = W * H
    count = N * W * H

    x2 = x.reshape(R, M)  # free contiguous view (no transpose pass over HBM)

    partial_s, partial_q = _row_partial_moments(x2)

    # tiny [N*C, chunk] -> [C] fold in plain XLA
    chunk = partial_s.shape[-1]
    ch_sums = partial_s.reshape(N, C, chunk).sum(axis=(0, 2))
    ch_sqs = partial_q.reshape(N, C, chunk).sum(axis=(0, 2))

    mean = ch_sums / count
    # Unbiased variance (ddof=1) matches torch.Tensor.std().  Single-pass
    # E[x^2]-mean^2 in f32; clamp at 0 to guard against cancellation.
    var = jnp.maximum((ch_sqs - count * mean * mean) / (count - 1), 0.0)
    std = jnp.sqrt(var)
    inv_std = 1.0 / std
    bias = -mean * inv_std

    # per-row (n, c) scale/bias; row r of x2 corresponds to channel r % C
    scale_rows = jnp.tile(inv_std, N).reshape(R, 1).astype(jnp.float32)
    bias_rows = jnp.tile(bias, N).reshape(R, 1).astype(jnp.float32)

    out2 = _normalize_rows(x2, scale_rows, bias_rows)
    return out2.reshape(N, C, W, H)


if __name__ == "__main__":
    key = jax.random.PRNGKey(0)
    N, C, W, H = 2, 3, 16, 16
    x = jax.random.normal(key, (N, C, W, H), dtype=jnp.float32) * 2.5 + 1.0

    out = standardize_transform(x)
    out = jax.block_until_ready(out)

    # pure-JAX reference (per-channel batch mean / unbiased std)
    mean_ref = jnp.mean(x, axis=(0, 2, 3), keepdims=True)
    std_ref = jnp.std(x, axis=(0, 2, 3), keepdims=True, ddof=1)
    ref = (x - mean_ref) / std_ref

    err = float(jnp.max(jnp.abs(out - ref)))
    if err > 1e-4:
        raise AssertionError(f"mismatch vs reference: max abs err = {err}")

    print("KERNEL_OK")
</pallas_src>

<mosaic_0001>
module attributes {stable_mosaic.version = 11 : i64} {
  func.func @kernel(%arg0: i32, %arg1: i32, %arg2: memref<6x256xf32, #tpu.memory_space<vmem>>, %arg3: memref<6x128xf32, #tpu.memory_space<vmem>>, %arg4: memref<6x128xf32, #tpu.memory_space<vmem>>) attributes {dimension_semantics = [#tpu.dimension_semantics<parallel>, #tpu.dimension_semantics<arbitrary>], iteration_bounds = array<i64: 1, 1>, scalar_prefetch = 0 : i64, scratch_operands = 0 : i64, tpu.core_type = #tpu.core_type<tc>, window_params = [{transform_indices = @transform_0, window_bounds = array<i64: 6, 256>}, {transform_indices = @transform_1, window_bounds = array<i64: 6, 128>}, {transform_indices = @transform_2, window_bounds = array<i64: 6, 128>}]} {
    %c0_i32 = arith.constant 0 : i32
    %0 = arith.cmpi eq, %arg1, %c0_i32 : i32
    %1 = arith.extui %0 : i1 to i32
    %c0_i32_0 = arith.constant 0 : i32
    %2 = arith.cmpi ne, %1, %c0_i32_0 : i32
    scf.if %2 {
      %cst = arith.constant 0.000000e+00 : f32
      %16 = vector.broadcast %cst : f32 to vector<6x128xf32>
      %c0_10 = arith.constant 0 : index
      %c0_11 = arith.constant 0 : index
      %17 = vector.load %arg3[%c0_10, %c0_11] : memref<6x128xf32, #tpu.memory_space<vmem>>, vector<6x128xf32>
      tpu.vector_store %arg3[%c0_10, %c0_11], %16 {strides = array<i32>} : memref<6x128xf32, #tpu.memory_space<vmem>>, vector<6x128xf32>,
      %cst_12 = arith.constant 0.000000e+00 : f32
      %18 = vector.broadcast %cst_12 : f32 to vector<6x128xf32>
      %c0_13 = arith.constant 0 : index
      %c0_14 = arith.constant 0 : index
      %19 = vector.load %arg4[%c0_13, %c0_14] : memref<6x128xf32, #tpu.memory_space<vmem>>, vector<6x128xf32>
      tpu.vector_store %arg4[%c0_13, %c0_14], %18 {strides = array<i32>} : memref<6x128xf32, #tpu.memory_space<vmem>>, vector<6x128xf32>,
    } else {
    }
    %c0 = arith.constant 0 : index
    %c0_1 = arith.constant 0 : index
    %3 = vector.load %arg2[%c0, %c0_1] : memref<6x256xf32, #tpu.memory_space<vmem>>, vector<6x256xf32>
    %c0_2 = arith.constant 0 : index
    %c0_3 = arith.constant 0 : index
    %4 = vector.load %arg3[%c0_2, %c0_3] : memref<6x128xf32, #tpu.memory_space<vmem>>, vector<6x128xf32>
    %c0_4 = arith.constant 0 : index
    %c0_5 = arith.constant 0 : index
    %5 = vector.load %arg4[%c0_4, %c0_5] : memref<6x128xf32, #tpu.memory_space<vmem>>, vector<6x128xf32>
    %6 = vector.extract_strided_slice %3 {offsets = [0, 0], sizes = [6, 128], strides = [1, 1]} : vector<6x256xf32> to vector<6x128xf32>
    %7 = arith.addf %4, %6 : vector<6x128xf32>
    %8 = arith.mulf %6, %6 : vector<6x128xf32>
    %9 = arith.addf %5, %8 : vector<6x128xf32>
    %10 = vector.extract_strided_slice %3 {offsets = [0, 128], sizes = [6, 128], strides = [1, 1]} : vector<6x256xf32> to vector<6x128xf32>
    %11 = arith.addf %7, %10 : vector<6x128xf32>
    %12 = arith.mulf %10, %10 : vector<6x128xf32>
    %13 = arith.addf %9, %12 : vector<6x128xf32>
    %c0_6 = arith.constant 0 : index
    %c0_7 = arith.constant 0 : index
    %14 = vector.load %arg3[%c0_6, %c0_7] : memref<6x128xf32, #tpu.memory_space<vmem>>, vector<6x128xf32>
    tpu.vector_store %arg3[%c0_6, %c0_7], %11 {strides = array<i32>} : memref<6x128xf32, #tpu.memory_space<vmem>>, vector<6x128xf32>,
    %c0_8 = arith.constant 0 : index
    %c0_9 = arith.constant 0 : index
    %15 = vector.load %arg4[%c0_8, %c0_9] : memref<6x128xf32, #tpu.memory_space<vmem>>, vector<6x128xf32>
    tpu.vector_store %arg4[%c0_8, %c0_9], %13 {strides = array<i32>} : memref<6x128xf32, #tpu.memory_space<vmem>>, vector<6x128xf32>,
    return
  }
  func.func @transform_0(%arg0: i32, %arg1: i32) -> (i32, i32) {
    %c0_i32 = arith.constant 0 : i32
    return %arg0, %arg1 : i32, i32
  }
  func.func @transform_1(%arg0: i32, %arg1: i32) -> (i32, i32) {
    %c0_i32 = arith.constant 0 : i32
    %c0_i32_0 = arith.constant 0 : i32
    return %arg0, %c0_i32 : i32, i32
  }
  func.func @transform_2(%arg0: i32, %arg1: i32) -> (i32, i32) {
    %c0_i32 = arith.constant 0 : i32
    %c0_i32_0 = arith.constant 0 : i32
    return %arg0, %c0_i32 : i32, i32
  }
}

</mosaic_0001>

<llo_original>
// kernel: tpu_custom_call.1
$region0: #{tpu_custom_call.1}
  #allocation0 [shape = 'u32[]', space=smem, size = 0x4, offset = 0x4, fixed_abs, tag = 'smem constant byte address 0x4 - core index']
  #allocation1 [shape = 'u32[144,128]{1,0:T(1,128)}', space=vmem, size = 0x12000, scoped, tag = 'internal scratch']
  %s0 = inlined_call_operand.hbm [shape: f32[6,256], index: 0, kind: input, shape index: {}]
  %s1 = inlined_call_operand.hbm [shape: f32[6,128], index: 1, kind: output, shape index: {0}]
  %s2 = inlined_call_operand.hbm [shape: f32[6,128], index: 2, kind: output, shape index: {1}]
  %3 = xla_tuple %s1, %s2
  %s4 = sld [smem:[#allocation0]]
  $region30: #{tpu_custom_call.1} parent=0
    _
  %s6 = ssub.s32 1, %s4
  %s7 = scalar_select 0, %s6, %s4
  $region1: #{tpu_custom_call.1} parent=0
    #allocation2 [shape = 'u8[8192]{0}', space=vmem, size = 0x2000, scoped, tag = 'input window, operand 0, single buffered']
    #allocation3 [shape = 's32[1]{0}', space=sflag, size = 0x4, scoped, tag = 'scoped memory for tpu_custom_call.1']
    #allocation4 [shape = 's32[1]{0}', space=sflag, size = 0x4, scoped, tag = 'scoped memory for tpu_custom_call.1']
    #allocation5 [shape = 'u8[4096]{0}', space=vmem, size = 0x1000, scoped, tag = 'output window, operand 0, single buffered']
    #allocation6 [shape = 'u8[4096]{0}', space=vmem, size = 0x1000, scoped, tag = 'output window, operand 1, single buffered']
    #allocation7 [shape = 's32[1]{0}', space=sflag, size = 0x4, scoped, tag = 'scoped memory for tpu_custom_call.1']
    %8 = vsyncpa [#allocation3], 0
    %9 = vsyncpa [#allocation4], 0
    %10 = vsyncpa [#allocation7], 0
    // Predicated region
    $region2: #{tpu_custom_call.1} parent=1 // pred_check
      _
    $region3: #{tpu_custom_call.1} parent=1 // pred_check_branch
      %12 = sbr.rel (0) target = $region5
    $region4: #{tpu_custom_call.1} parent=1 // pred_region
      %s14 = ssub.s32 256, 256
      %15 = vsyncadd [#allocation3], %s14
      %s17 = sshll.u32 [#allocation2], 4
      %s18 = int_to_ptr.vmem [resolvable:$true] %s17
      %20 = dma.hbm_to_vmem [thread:$0]  %s0, 256, %s18, [#allocation3]
    $region5: #{tpu_custom_call.1} parent=1 // pred_fallthru
      _
    // Predicated region
    $region6: #{tpu_custom_call.1} parent=1 // pred_check
      _
    $region7: #{tpu_custom_call.1} parent=1 // pred_check_branch
      %22 = sbr.rel (0) target = $region9
    $region8: #{tpu_custom_call.1} parent=1 // pred_region
      %23 = dma.done [#allocation3], 256
    $region9: #{tpu_custom_call.1} parent=1 // pred_fallthru
      _
    %p24 = scmp.eq.s32.totalorder 0, 0
    // Predicated region
    $region10: #{tpu_custom_call.1} parent=1 // pred_check
      %p25 = pneg %p24
    $region11: #{tpu_custom_call.1} parent=1 // pred_check_branch
      %27 = sbr.rel (%p25) target = $region13
    $region12: #{tpu_custom_call.1} parent=1 // pred_region
      %28 = vst [vmem:[#allocation5] sm:$0x3f] 0.0
      %29 = vst [vmem:[#allocation6] sm:$0x3f] 0.0
    $region13: #{tpu_custom_call.1} parent=1 // pred_fallthru
      _
    %v30 = vld [vmem:[#allocation2] sm:$0x3f]
    %v31 = vld [vmem:[#allocation2 + $0x8] sm:$0x3f]
    %v32 = vld [vmem:[#allocation5] sm:$0x3f]
    %v33 = vld [vmem:[#allocation6] sm:$0x3f]
    %v34 = vadd.f32 %v32, %v30
    %v35 = vmul.f32 %v30, %v30
    %v36 = vadd.f32 %v33, %v35
    %v37 = vadd.f32 %v34, %v31
    %v38 = vmul.f32 %v31, %v31
    %v39 = vadd.f32 %v36, %v38
    %40 = vst [vmem:[#allocation5] sm:$0x3f] %v37
    %41 = vst [vmem:[#allocation6] sm:$0x3f] %v39
    // Predicated region
    $region14: #{tpu_custom_call.1} parent=1 // pred_check
      _
    $region15: #{tpu_custom_call.1} parent=1 // pred_check_branch
      %43 = sbr.rel (0) target = $region17
    $region16: #{tpu_custom_call.1} parent=1 // pred_region
      %s45 = ssub.s32 128, 128
      %46 = vsyncadd [#allocation4], %s45
      %s48 = sshll.u32 [#allocation5], 4
      %s49 = int_to_ptr.vmem [resolvable:$true] %s48
      %51 = dma.vmem_to_hbm [thread:$0]  %s49, 128, %s1, [#allocation4]
    $region17: #{tpu_custom_call.1} parent=1 // pred_fallthru
      _
    // Predicated region
    $region18: #{tpu_custom_call.1} parent=1 // pred_check
      _
    $region19: #{tpu_custom_call.1} parent=1 // pred_check_branch
      %53 = sbr.rel (0) target = $region21
    $region20: #{tpu_custom_call.1} parent=1 // pred_region
      %s55 = ssub.s32 128, 128
      %56 = vsyncadd [#allocation7], %s55
      %s58 = sshll.u32 [#allocation6], 4
      %s59 = int_to_ptr.vmem [resolvable:$true] %s58
      %61 = dma.vmem_to_hbm [thread:$0]  %s59, 128, %s2, [#allocation7]
    $region21: #{tpu_custom_call.1} parent=1 // pred_fallthru
      _
    // Predicated region
    $region22: #{tpu_custom_call.1} parent=1 // pred_check
      _
    $region23: #{tpu_custom_call.1} parent=1 // pred_check_branch
      %63 = sbr.rel (0) target = $region25
    $region24: #{tpu_custom_call.1} parent=1 // pred_region
      %64 = dma.done [#allocation4], 128
    $region25: #{tpu_custom_call.1} parent=1 // pred_fallthru
      _
    // Predicated region
    $region26: #{tpu_custom_call.1} parent=1 // pred_check
      _
    $region27: #{tpu_custom_call.1} parent=1 // pred_check_branch
      %66 = sbr.rel (0) target = $region29
    $region28: #{tpu_custom_call.1} parent=1 // pred_region
      %67 = dma.done [#allocation7], 128
    $region29: #{tpu_custom_call.1} parent=1 // pred_fallthru
      _
    %68 = vsyncpa [#allocation3], 1
    %69 = vsyncpa [#allocation4], 1
    %70 = vsyncpa [#allocation7], 1

</llo_original>
